<compile_context>
chip_gen: v6e
topology: v6e:2x2x1
jax: 0.10.0
libtpu: 0.0.40
codegen_flags: <defaults>
</compile_context>

<pallas_src>
import jax
import jax.numpy as jnp
from jax import lax
from jax.experimental import pallas as pl
from jax.experimental.pallas import tpu as pltpu


def _spike_add_kernel(vthr_ref, a_ref, b_ref, w0_ref, w1_ref, out_ref, mem_ref):
    # vthr_ref   : (1,) scalar-prefetch (SMEM)
    # a_ref/b_ref: (bm, bn) VMEM input tiles
    # w0/w1_ref  : (bm, 1) per-row (== per-channel) weights
    # out_ref    : (block_t, bm, bn) spike tile for this T-chunk
    # mem_ref    : (bm, bn) VMEM scratch; membrane potential carried across T-chunks
    vthr = vthr_ref[0]

    # New (row, lane) tile: reset the membrane potential.
    @pl.when(pl.program_id(2) == 0)
    def _():
        mem_ref[...] = jnp.zeros_like(mem_ref)

    # Inputs are replicated across timesteps in the reference, so the per-step
    # drive is identical every step -> compute once per tile (VPU elementwise;
    # hidden under the dominant output writeback).
    x = a_ref[...] * w0_ref[...] + b_ref[...] * w1_ref[...]

    block_t = out_ref.shape[0]

    def step(t, mem):
        mem = mem + x
        fired = mem >= vthr
        out_ref[t] = fired.astype(out_ref.dtype)      # 0/1 spikes
        return jnp.where(fired, mem - vthr, mem)      # subtraction reset

    mem_ref[...] = lax.fori_loop(0, block_t, step, mem_ref[...], unroll=True)


def _round_up(x, m):
    return ((x + m - 1) // m) * m


def _vmem_budget_and_limit():
    """Per-generation VMEM budget (for tile sizing) and scoped limit (bytes)."""
    cap = 64 << 20                       # conservative default (v7x physical)
    try:
        cap = int(getattr(pltpu.get_tpu_info(), "vmem_capacity_bytes", cap))
    except Exception:
        pass
    budget = min(int(cap * 0.60), 96 << 20)   # ~38 MiB on v7x, ~77 MiB on v5e/v6e
    limit = min(int(cap * 0.75), 112 << 20)   # raised scoped vmem limit
    return budget, limit


def _pick_time_block(timesteps, max_block=8):
    """Largest divisor of T up to `max_block` (bounds the output slab in VMEM)."""
    for cand in range(min(timesteps, max_block), 0, -1):
        if timesteps % cand == 0:
            return cand
    return 1


def _pick_tiles(n_rows, n_cols, block_t, out_itemsize, budget):
    """Choose (bm, bn).

    bn: a 128-multiple divisor of n_cols (unmasked lane-dense stores), or the
        full row when H*W is not 128-aligned.
    bm: preferably a no-padding row tile (multiple-of-8 divisor of n_rows, or
        the full n_rows), largest that keeps the double-buffered working set
        under `budget`.  Falls back to a padded multiple-of-8 tile only when
        no exact tile fits (avoids a full post-kernel slice copy otherwise).
    """
    # Per-element / per-row VMEM bytes inside one (bm, bn) tile:
    #   a, b inputs : 2 arrays x 2 pipeline buffers x 4 B
    #   mem scratch : 4 B
    #   spike out   : 2 pipeline buffers x block_t x out_itemsize
    #   weights     : 2 arrays x 2 buffers x (bm, 1) tiles padded to 128 lanes
    per_elem = 2 * 2 * 4 + 4 + 2 * block_t * out_itemsize
    per_row = 2 * 2 * 128 * 4
    reserve = 256 << 10

    if n_cols % 128 == 0:
        bn_cands = [d for d in range(n_cols, 127, -128) if n_cols % d == 0]
    else:
        bn_cands = [n_cols]              # full-row block (== array dim) is legal

    divs = sorted(
        {d for i in range(1, int(n_rows ** 0.5) + 1) if n_rows % i == 0
         for d in (i, n_rows // i)},
        reverse=True)
    bm_exact = [d for d in divs if d % 8 == 0 or d == n_rows]

    def fits(bm, bn):
        return per_elem * bm * bn + per_row * bm + reserve <= budget

    for bn in bn_cands:
        for bm in bm_exact:
            if fits(bm, bn):
                return bm, bn            # no padding needed

    # Fallback: padded rows (multiple of 8), smallest lane tile, as many rows
    # as the budget allows (pad rows are sliced off after the call).
    bn = bn_cands[-1]
    bm = (budget - reserve) // (per_elem * bn + per_row)
    bm = max((bm // 8) * 8, 8)
    bm = min(bm, _round_up(n_rows, 8))
    return bm, bn


def spike_add_snn(a, b, weight, vthr, timesteps, *, out_dtype=jnp.float32):
    """SpikeAdd forward, mode='snn', plain-tensor (non-SpikeTensor) inputs.

    a, b   : (B, C, H, W) float arrays (NCHW)
    weight : (C, 2)
    vthr   : scalar / shape-(1,) threshold (the module's Vthr buffer)
    Returns (T*B, C, H, W) spikes in `out_dtype` (0/1 values; bf16 is exact and
    cuts the dominant HBM writeback by ~33%).
    """
    B, C, H, W = a.shape
    BC, HW = B * C, H * W
    T = int(timesteps)

    a2 = a.reshape(BC, HW).astype(jnp.float32)
    b2 = b.reshape(BC, HW).astype(jnp.float32)
    # Per-channel weights broadcast per row (row index = b*C + c).
    w0 = jnp.tile(weight[:, 0].astype(jnp.float32), (B,)).reshape(BC, 1)
    w1 = jnp.tile(weight[:, 1].astype(jnp.float32), (B,)).reshape(BC, 1)
    vthr = jnp.asarray(vthr, jnp.float32).reshape(1)

    out_dtype = jnp.dtype(out_dtype)
    block_t = _pick_time_block(T)
    budget, vmem_limit = _vmem_budget_and_limit()
    bm, bn = _pick_tiles(BC, HW, block_t, out_dtype.itemsize, budget)

    # Rare fallback path: zero-pad rows to a multiple of the row tile so no
    # partial blocks exist (pad is sliced off below).  Common shapes take the
    # exact-tile path above and never pay this pad/slice.
    BCp = _round_up(BC, bm)
    if BCp != BC:
        pad = ((0, BCp - BC), (0, 0))
        a2, b2 = jnp.pad(a2, pad), jnp.pad(b2, pad)
        w0, w1 = jnp.pad(w0, pad), jnp.pad(w1, pad)

    grid = (BCp // bm, HW // bn, T // block_t)

    out = pl.pallas_call(
        _spike_add_kernel,
        out_shape=jax.ShapeDtypeStruct((T, BCp, HW), out_dtype),
        grid_spec=pltpu.PrefetchScalarGridSpec(
            num_scalar_prefetch=1,
            grid=grid,
            in_specs=[
                pl.BlockSpec((bm, bn), lambda i, j, t, v: (i, j)),
                pl.BlockSpec((bm, bn), lambda i, j, t, v: (i, j)),
                pl.BlockSpec((bm, 1), lambda i, j, t, v: (i, 0)),
                pl.BlockSpec((bm, 1), lambda i, j, t, v: (i, 0)),
            ],
            out_specs=pl.BlockSpec(
                (block_t, bm, bn), lambda i, j, t, v: (t, i, j)),
            scratch_shapes=[pltpu.VMEM((bm, bn), jnp.float32)],
        ),
        compiler_params=pltpu.CompilerParams(
            dimension_semantics=("parallel", "parallel", "arbitrary"),
            vmem_limit_bytes=int(vmem_limit),
        ),
    )(vthr, a2, b2, w0, w1)

    if BCp != BC:
        out = out[:, :BC, :]
    # (T, B*C, H*W) -> (T*B, C, H, W), matching torch.cat(spikes, 0) layout.
    return out.reshape(T * B, C, H, W)


def _reference(a, b, weight, vthr, timesteps):
    """Pure-JAX replica of the PyTorch mode='snn' forward (for verification)."""
    B, C, H, W = a.shape
    w0 = weight[:, 0].reshape(1, C, 1, 1)
    w1 = weight[:, 1].reshape(1, C, 1, 1)
    x = a * w0 + b * w1                      # per-step drive (replicated input)
    mem = jnp.zeros_like(x)
    spikes = []
    for _ in range(timesteps):
        mem = mem + x
        spike = (mem >= vthr).astype(jnp.float32)
        mem = mem - spike * vthr
        spikes.append(spike)
    return jnp.concatenate(spikes, 0)        # (T*B, C, H, W)


if __name__ == "__main__":
    key = jax.random.PRNGKey(0)
    ka, kb, kw, ka2, kb2, kw2 = jax.random.split(key, 6)

    # --- case 1: 128-aligned lanes, single T-chunk -------------------------
    B, C, H, W = 2, 4, 16, 16
    T = 4
    a = jax.random.uniform(ka, (B, C, H, W), jnp.float32, minval=0.0, maxval=1.0)
    b = jax.random.uniform(kb, (B, C, H, W), jnp.float32, minval=0.0, maxval=1.0)
    # Module init is ones([C, 2]); use a deterministic non-trivial weight so the
    # per-channel weighted add is actually exercised.
    weight = jax.random.uniform(kw, (C, 2), jnp.float32, minval=0.5, maxval=1.5)
    vthr = jnp.ones((1,), jnp.float32)       # Vthr buffer = ones(1)
    # out_scales / leakage / ma / mb / shift_bit buffers only tag SpikeTensor
    # metadata or other modes; the 'snn' spike data path is fully covered here.

    out = jax.block_until_ready(spike_add_snn(a, b, weight, vthr, T))
    ref = _reference(a, b, weight, float(vthr[0]), T)
    assert out.shape == (T * B, C, H, W)
    assert out.dtype == jnp.float32
    assert jnp.allclose(out, ref), "Pallas kernel mismatch vs reference (f32)"

    # Bandwidth-optimized spike dtype (0/1 is exact in bf16).
    out_bf16 = jax.block_until_ready(
        spike_add_snn(a, b, weight, vthr, T, out_dtype=jnp.bfloat16))
    assert jnp.allclose(out_bf16.astype(jnp.float32), ref), \
        "Pallas kernel mismatch vs reference (bf16)"

    # --- case 2: T large enough to need multiple T-chunks (carried membrane) -
    T2 = 16
    out2 = jax.block_until_ready(spike_add_snn(a, b, weight, vthr, T2))
    ref2 = _reference(a, b, weight, float(vthr[0]), T2)
    assert out2.shape == (T2 * B, C, H, W)
    assert jnp.allclose(out2, ref2), "Pallas kernel mismatch vs reference (T=16)"

    # --- case 3: unaligned rows (B*C=6) and lanes (H*W=240) -----------------
    B3, C3, H3, W3, T3 = 2, 3, 12, 20, 3
    a3 = jax.random.uniform(ka2, (B3, C3, H3, W3), jnp.float32, 0.0, 1.0)
    b3 = jax.random.uniform(kb2, (B3, C3, H3, W3), jnp.float32, 0.0, 1.0)
    w3 = jax.random.uniform(kw2, (C3, 2), jnp.float32, minval=0.5, maxval=1.5)
    out3 = jax.block_until_ready(spike_add_snn(a3, b3, w3, vthr, T3))
    ref3 = _reference(a3, b3, w3, float(vthr[0]), T3)
    assert out3.shape == (T3 * B3, C3, H3, W3)
    assert jnp.allclose(out3, ref3), "Pallas kernel mismatch vs reference (unaligned)"

    print("KERNEL_OK")
</pallas_src>

<mosaic_0001>
module attributes {stable_mosaic.version = 11 : i64} {
  func.func @_spike_add_kernel(%arg0: i32, %arg1: i32, %arg2: i32, %arg3: memref<1xf32, #tpu.memory_space<smem>>, %arg4: memref<8x256xf32, #tpu.memory_space<vmem>>, %arg5: memref<8x256xf32, #tpu.memory_space<vmem>>, %arg6: memref<8x1xf32, #tpu.memory_space<vmem>>, %arg7: memref<8x1xf32, #tpu.memory_space<vmem>>, %arg8: memref<4x8x256xf32, #tpu.memory_space<vmem>>, %arg9: memref<8x256xf32, #tpu.memory_space<vmem>>) attributes {dimension_semantics = [#tpu.dimension_semantics<parallel>, #tpu.dimension_semantics<parallel>, #tpu.dimension_semantics<arbitrary>], iteration_bounds = array<i64: 1, 1, 1>, scalar_prefetch = 1 : i64, scratch_operands = 1 : i64, tpu.core_type = #tpu.core_type<tc>, window_params = [{transform_indices = @transform_0, window_bounds = array<i64: 8, 256>}, {transform_indices = @transform_1, window_bounds = array<i64: 8, 256>}, {transform_indices = @transform_2, window_bounds = array<i64: 8, 1>}, {transform_indices = @transform_3, window_bounds = array<i64: 8, 1>}, {transform_indices = @transform_4, window_bounds = array<i64: 4, 8, 256>}]} {
    %c0 = arith.constant 0 : index
    %0 = memref.load %arg3[%c0] : memref<1xf32, #tpu.memory_space<smem>>
    %c0_i32 = arith.constant 0 : i32
    %1 = arith.cmpi eq, %arg2, %c0_i32 : i32
    %2 = arith.extui %1 : i1 to i32
    %c0_i32_0 = arith.constant 0 : i32
    %3 = arith.cmpi ne, %2, %c0_i32_0 : i32
    scf.if %3 {
      %cst = arith.constant 0.000000e+00 : f32
      %63 = vector.broadcast %cst : f32 to vector<8x256xf32>
      %c0_22 = arith.constant 0 : index
      %c0_23 = arith.constant 0 : index
      %64 = vector.load %arg9[%c0_22, %c0_23] : memref<8x256xf32, #tpu.memory_space<vmem>>, vector<8x256xf32>
      tpu.vector_store %arg9[%c0_22, %c0_23], %63 {strides = array<i32>} : memref<8x256xf32, #tpu.memory_space<vmem>>, vector<8x256xf32>,
    } else {
    }
    %c0_1 = arith.constant 0 : index
    %c0_2 = arith.constant 0 : index
    %4 = vector.load %arg4[%c0_1, %c0_2] : memref<8x256xf32, #tpu.memory_space<vmem>>, vector<8x256xf32>
    %c0_3 = arith.constant 0 : index
    %c0_4 = arith.constant 0 : index
    %5 = vector.load %arg6[%c0_3, %c0_4] : memref<8x1xf32, #tpu.memory_space<vmem>>, vector<8x1xf32>
    %6 = vector.broadcast %5 : vector<8x1xf32> to vector<8x256xf32>
    %7 = arith.mulf %4, %6 : vector<8x256xf32>
    %c0_5 = arith.constant 0 : index
    %c0_6 = arith.constant 0 : index
    %8 = vector.load %arg5[%c0_5, %c0_6] : memref<8x256xf32, #tpu.memory_space<vmem>>, vector<8x256xf32>
    %c0_7 = arith.constant 0 : index
    %c0_8 = arith.constant 0 : index
    %9 = vector.load %arg7[%c0_7, %c0_8] : memref<8x1xf32, #tpu.memory_space<vmem>>, vector<8x1xf32>
    %10 = vector.broadcast %9 : vector<8x1xf32> to vector<8x256xf32>
    %11 = arith.mulf %8, %10 : vector<8x256xf32>
    %12 = arith.addf %7, %11 : vector<8x256xf32>
    %c0_9 = arith.constant 0 : index
    %c0_10 = arith.constant 0 : index
    %13 = vector.load %arg9[%c0_9, %c0_10] : memref<8x256xf32, #tpu.memory_space<vmem>>, vector<8x256xf32>
    %c0_i32_11 = arith.constant 0 : i32
    %14 = arith.addf %13, %12 : vector<8x256xf32>
    %15 = vector.broadcast %0 : f32 to vector<8x256xf32>
    %16 = arith.cmpf oge, %14, %15 : vector<8x256xf32>
    %17 = arith.extui %16 : vector<8x256xi1> to vector<8x256xi32>
    %18 = arith.sitofp %17 : vector<8x256xi32> to vector<8x256xf32>
    %19 = arith.index_cast %c0_i32_11 : i32 to index
    %c0_12 = arith.constant 0 : index
    %c0_13 = arith.constant 0 : index
    %20 = vector.load %arg8[%19, %c0_12, %c0_13] : memref<4x8x256xf32, #tpu.memory_space<vmem>>, vector<1x8x256xf32>
    %21 = vector.shape_cast %20 : vector<1x8x256xf32> to vector<8x256xf32>
    %22 = vector.shape_cast %18 : vector<8x256xf32> to vector<1x8x256xf32>
    tpu.vector_store %arg8[%19, %c0_12, %c0_13], %22 {strides = array<i32>} : memref<4x8x256xf32, #tpu.memory_space<vmem>>, vector<1x8x256xf32>,
    %23 = vector.broadcast %0 : f32 to vector<8x256xf32>
    %24 = arith.subf %14, %23 : vector<8x256xf32>
    %25 = arith.select %16, %24, %14 : vector<8x256xi1>, vector<8x256xf32>
    %c1_i32 = arith.constant 1 : i32
    %26 = arith.addf %25, %12 : vector<8x256xf32>
    %27 = vector.broadcast %0 : f32 to vector<8x256xf32>
    %28 = arith.cmpf oge, %26, %27 : vector<8x256xf32>
    %29 = arith.extui %28 : vector<8x256xi1> to vector<8x256xi32>
    %30 = arith.sitofp %29 : vector<8x256xi32> to vector<8x256xf32>
    %31 = arith.index_cast %c1_i32 : i32 to index
    %c0_14 = arith.constant 0 : index
    %c0_15 = arith.constant 0 : index
    %32 = vector.load %arg8[%31, %c0_14, %c0_15] : memref<4x8x256xf32, #tpu.memory_space<vmem>>, vector<1x8x256xf32>
    %33 = vector.shape_cast %32 : vector<1x8x256xf32> to vector<8x256xf32>
    %34 = vector.shape_cast %30 : vector<8x256xf32> to vector<1x8x256xf32>
    tpu.vector_store %arg8[%31, %c0_14, %c0_15], %34 {strides = array<i32>} : memref<4x8x256xf32, #tpu.memory_space<vmem>>, vector<1x8x256xf32>,
    %35 = vector.broadcast %0 : f32 to vector<8x256xf32>
    %36 = arith.subf %26, %35 : vector<8x256xf32>
    %37 = arith.select %28, %36, %26 : vector<8x256xi1>, vector<8x256xf32>
    %c2_i32 = arith.constant 2 : i32
    %38 = arith.addf %37, %12 : vector<8x256xf32>
    %39 = vector.broadcast %0 : f32 to vector<8x256xf32>
    %40 = arith.cmpf oge, %38, %39 : vector<8x256xf32>
    %41 = arith.extui %40 : vector<8x256xi1> to vector<8x256xi32>
    %42 = arith.sitofp %41 : vector<8x256xi32> to vector<8x256xf32>
    %43 = arith.index_cast %c2_i32 : i32 to index
    %c0_16 = arith.constant 0 : index
    %c0_17 = arith.constant 0 : index
    %44 = vector.load %arg8[%43, %c0_16, %c0_17] : memref<4x8x256xf32, #tpu.memory_space<vmem>>, vector<1x8x256xf32>
    %45 = vector.shape_cast %44 : vector<1x8x256xf32> to vector<8x256xf32>
    %46 = vector.shape_cast %42 : vector<8x256xf32> to vector<1x8x256xf32>
    tpu.vector_store %arg8[%43, %c0_16, %c0_17], %46 {strides = array<i32>} : memref<4x8x256xf32, #tpu.memory_space<vmem>>, vector<1x8x256xf32>,
    %47 = vector.broadcast %0 : f32 to vector<8x256xf32>
    %48 = arith.subf %38, %47 : vector<8x256xf32>
    %49 = arith.select %40, %48, %38 : vector<8x256xi1>, vector<8x256xf32>
    %c3_i32 = arith.constant 3 : i32
    %50 = arith.addf %49, %12 : vector<8x256xf32>
    %51 = vector.broadcast %0 : f32 to vector<8x256xf32>
    %52 = arith.cmpf oge, %50, %51 : vector<8x256xf32>
    %53 = arith.extui %52 : vector<8x256xi1> to vector<8x256xi32>
    %54 = arith.sitofp %53 : vector<8x256xi32> to vector<8x256xf32>
    %55 = arith.index_cast %c3_i32 : i32 to index
    %c0_18 = arith.constant 0 : index
    %c0_19 = arith.constant 0 : index
    %56 = vector.load %arg8[%55, %c0_18, %c0_19] : memref<4x8x256xf32, #tpu.memory_space<vmem>>, vector<1x8x256xf32>
    %57 = vector.shape_cast %56 : vector<1x8x256xf32> to vector<8x256xf32>
    %58 = vector.shape_cast %54 : vector<8x256xf32> to vector<1x8x256xf32>
    tpu.vector_store %arg8[%55, %c0_18, %c0_19], %58 {strides = array<i32>} : memref<4x8x256xf32, #tpu.memory_space<vmem>>, vector<1x8x256xf32>,
    %59 = vector.broadcast %0 : f32 to vector<8x256xf32>
    %60 = arith.subf %50, %59 : vector<8x256xf32>
    %61 = arith.select %52, %60, %50 : vector<8x256xi1>, vector<8x256xf32>
    %c4_i32 = arith.constant 4 : i32
    %c0_20 = arith.constant 0 : index
    %c0_21 = arith.constant 0 : index
    %62 = vector.load %arg9[%c0_20, %c0_21] : memref<8x256xf32, #tpu.memory_space<vmem>>, vector<8x256xf32>
    tpu.vector_store %arg9[%c0_20, %c0_21], %61 {strides = array<i32>} : memref<8x256xf32, #tpu.memory_space<vmem>>, vector<8x256xf32>,
    return
  }
  func.func @transform_0(%arg0: i32, %arg1: i32, %arg2: i32, %arg3: memref<1xf32, #tpu.memory_space<smem>>) -> (i32, i32) {
    %c0_i32 = arith.constant 0 : i32
    return %arg0, %arg1 : i32, i32
  }
  func.func @transform_1(%arg0: i32, %arg1: i32, %arg2: i32, %arg3: memref<1xf32, #tpu.memory_space<smem>>) -> (i32, i32) {
    %c0_i32 = arith.constant 0 : i32
    return %arg0, %arg1 : i32, i32
  }
  func.func @transform_2(%arg0: i32, %arg1: i32, %arg2: i32, %arg3: memref<1xf32, #tpu.memory_space<smem>>) -> (i32, i32) {
    %c0_i32 = arith.constant 0 : i32
    %c0_i32_0 = arith.constant 0 : i32
    return %arg0, %c0_i32 : i32, i32
  }
  func.func @transform_3(%arg0: i32, %arg1: i32, %arg2: i32, %arg3: memref<1xf32, #tpu.memory_space<smem>>) -> (i32, i32) {
    %c0_i32 = arith.constant 0 : i32
    %c0_i32_0 = arith.constant 0 : i32
    return %arg0, %c0_i32 : i32, i32
  }
  func.func @transform_4(%arg0: i32, %arg1: i32, %arg2: i32, %arg3: memref<1xf32, #tpu.memory_space<smem>>) -> (i32, i32, i32) {
    %c0_i32 = arith.constant 0 : i32
    return %arg2, %arg0, %arg1 : i32, i32, i32
  }
}

</mosaic_0001>

<llo_original>
// kernel: tpu_custom_call.1
$region0: #{tpu_custom_call.1}
  #allocation0 [shape = 'u32[]', space=smem, size = 0x4, offset = 0x4, fixed_abs, tag = 'smem constant byte address 0x4 - core index']
  #allocation1 [shape = 'u32[144,128]{1,0:T(1,128)}', space=vmem, size = 0x12000, scoped, tag = 'internal scratch']
  #allocation2 [shape = 'f32[8,256]{1,0:T(8,128)}', space=vmem, size = 0x2000, scoped, tag = 'scratch operand']
  #allocation3 [shape = 's32[1]{0}', space=sflag, size = 0x4, scoped, tag = 'scoped memory for tpu_custom_call.1']
  #allocation4 [shape = 'f32[1]{0:T(128)S(6)}', space=smem, size = 0x200, scoped, tag = 'prefetched SMEM operand 0']
  %s0 = inlined_call_operand.<no memory space> [shape: f32[1], index: 0, kind: input, shape index: {}]
  %s1 = inlined_call_operand.vmem [shape: f32[8,256], index: 1, kind: input, shape index: {}]
  %s2 = inlined_call_operand.hbm [shape: f32[8,256], index: 2, kind: input, shape index: {}]
  %s3 = inlined_call_operand.vmem [shape: f32[8,1], index: 3, kind: input, shape index: {}]
  %s4 = inlined_call_operand.vmem [shape: f32[8,1], index: 4, kind: input, shape index: {}]
  %s5 = inlined_call_operand.hbm [shape: f32[4,8,256], index: 5, kind: output, shape index: {}]
  %s6 = sld [smem:[#allocation0]]
  $region34: #{tpu_custom_call.1} parent=0
    _
  %s8 = ssub.s32 1, %s6
  %s9 = scalar_select 0, %s8, %s6
  %10 = sst [smem:[#allocation4]] %s0
  $region1: #{tpu_custom_call.1} parent=0
    #allocation5 [shape = 'u8[8192]{0}', space=vmem, size = 0x2000, scoped, tag = 'input window, operand 2, single buffered']
    #allocation6 [shape = 's32[1]{0}', space=sflag, size = 0x4, scoped, tag = 'scoped memory for tpu_custom_call.1']
    #allocation7 [shape = 's32[1]{0}', space=sflag, size = 0x4, scoped, tag = 'scoped memory for tpu_custom_call.1']
    #allocation8 [shape = 'u8[32768]{0}', space=vmem, size = 0x8000, scoped, tag = 'output window, operand 0, single buffered']
    %11 = vsyncpa [#allocation6], 0
    %12 = vsyncpa [#allocation7], 0
    // Predicated region
    $region2: #{tpu_custom_call.1} parent=1 // pred_check
      _
    $region3: #{tpu_custom_call.1} parent=1 // pred_check_branch
      %14 = sbr.rel (0) target = $region5
    $region4: #{tpu_custom_call.1} parent=1 // pred_region
      _
    $region5: #{tpu_custom_call.1} parent=1 // pred_fallthru
      _
    // Predicated region
    $region6: #{tpu_custom_call.1} parent=1 // pred_check
      _
    $region7: #{tpu_custom_call.1} parent=1 // pred_check_branch
      %16 = sbr.rel (0) target = $region9
    $region8: #{tpu_custom_call.1} parent=1 // pred_region
      %s18 = ssub.s32 256, 256
      %19 = vsyncadd [#allocation6], %s18
      %s21 = sshll.u32 [#allocation5], 4
      %s22 = int_to_ptr.vmem [resolvable:$true] %s21
      %24 = dma.hbm_to_vmem [thread:$0]  %s2, 256, %s22, [#allocation6]
    $region9: #{tpu_custom_call.1} parent=1 // pred_fallthru
      _
    // Predicated region
    $region10: #{tpu_custom_call.1} parent=1 // pred_check
      _
    $region11: #{tpu_custom_call.1} parent=1 // pred_check_branch
      %26 = sbr.rel (0) target = $region13
    $region12: #{tpu_custom_call.1} parent=1 // pred_region
      _
    $region13: #{tpu_custom_call.1} parent=1 // pred_fallthru
      _
    // Predicated region
    $region14: #{tpu_custom_call.1} parent=1 // pred_check
      _
    $region15: #{tpu_custom_call.1} parent=1 // pred_check_branch
      %28 = sbr.rel (0) target = $region17
    $region16: #{tpu_custom_call.1} parent=1 // pred_region
      _
    $region17: #{tpu_custom_call.1} parent=1 // pred_fallthru
      _
    // Predicated region
    $region18: #{tpu_custom_call.1} parent=1 // pred_check
      _
    $region19: #{tpu_custom_call.1} parent=1 // pred_check_branch
      %30 = sbr.rel (0) target = $region21
    $region20: #{tpu_custom_call.1} parent=1 // pred_region
      %31 = dma.done [#allocation6], 256
    $region21: #{tpu_custom_call.1} parent=1 // pred_fallthru
      _
    %s32 = sld [smem:[#allocation4]]
    %p33 = scmp.eq.s32.totalorder 0, 0
    // Predicated region
    $region22: #{tpu_custom_call.1} parent=1 // pred_check
      %p34 = pneg %p33
    $region23: #{tpu_custom_call.1} parent=1 // pred_check_branch
      %36 = sbr.rel (%p34) target = $region25
    $region24: #{tpu_custom_call.1} parent=1 // pred_region
      %37 = vst [vmem:[#allocation2] sm:$0xff] 0.0
      %38 = vst [vmem:[#allocation2 + $0x8] sm:$0xff] 0.0
    $region25: #{tpu_custom_call.1} parent=1 // pred_fallthru
      _
    %v39 = vld [vmem:[%s1] sm:$0xff]
    %v40 = vld [vmem:[%s1 + $0x8] sm:$0xff]
    %v41 = vld [vmem:[%s3] sm:$0xff]
    %43 = vset.pattern.permute.xlu0 0
    %44 = vperm.xlu0 %43, %v41
    %v45 = vpop.permute.xlu0 %44
    %v47 = vmul.f32 %v39, %v45
    %v48 = vmul.f32 %v40, %v45
    %v49 = vld [vmem:[#allocation5] sm:$0xff]
    %v50 = vld [vmem:[#allocation5 + $0x8] sm:$0xff]
    %v51 = vld [vmem:[%s4] sm:$0xff]
    %53 = vset.pattern.permute.xlu0 0
    %54 = vperm.xlu0 %53, %v51
    %v55 = vpop.permute.xlu0 %54
    %v57 = vmul.f32 %v49, %v55
    %v58 = vmul.f32 %v50, %v55
    %v59 = vadd.f32 %v47, %v57
    %v60 = vadd.f32 %v48, %v58
    %v61 = vld [vmem:[#allocation2] sm:$0xff]
    %v62 = vld [vmem:[#allocation2 + $0x8] sm:$0xff]
    %v63 = vadd.f32 %v61, %v59
    %v64 = vadd.f32 %v62, %v60
    %v65 = vstv %s32
    %vm66 = vcmp.ge.f32.partialorder %v63, %v65
    %vm67 = vcmp.ge.f32.partialorder %v64, %v65
    %v68 = vsel %vm66, 1, 0
    %v69 = vsel %vm67, 1, 0
    %v70 = vcvt.s32.f32 %v68
    %v71 = vcvt.s32.f32 %v69
    %72 = vst [vmem:[#allocation8] sm:$0xff] %v70
    %73 = vst [vmem:[#allocation8 + $0x8] sm:$0xff] %v71
    %v74 = vsub.f32 %v63, %v65
    %v75 = vsub.f32 %v64, %v65
    %v76 = vsel %vm66, %v74, %v63
    %v77 = vsel %vm67, %v75, %v64
    %v78 = vadd.f32 %v76, %v59
    %v79 = vadd.f32 %v77, %v60
    %vm80 = vcmp.ge.f32.partialorder %v78, %v65
    %vm81 = vcmp.ge.f32.partialorder %v79, %v65
    %v82 = vsel %vm80, 1, 0
    %v83 = vsel %vm81, 1, 0
    %v84 = vcvt.s32.f32 %v82
    %v85 = vcvt.s32.f32 %v83
    %s86 = scalar_lea.vmem [#allocation8], 16
    %87 = vst [vmem:[%s86] sm:$0xff] %v84
    %88 = vst [vmem:[%s86 + $0x8] sm:$0xff] %v85
    %v89 = vsub.f32 %v78, %v65
    %v90 = vsub.f32 %v79, %v65
    %v91 = vsel %vm80, %v89, %v78
    %v92 = vsel %vm81, %v90, %v79
    %v93 = vadd.f32 %v91, %v59
    %v94 = vadd.f32 %v92, %v60
    %vm95 = vcmp.ge.f32.partialorder %v93, %v65
    %vm96 = vcmp.ge.f32.partialorder %v94, %v65
    %v97 = vsel %vm95, 1, 0
    %v98 = vsel %vm96, 1, 0
    %v99 = vcvt.s32.f32 %v97
    %v100 = vcvt.s32.f32 %v98
    %s101 = scalar_lea.vmem [#allocation8], 32
    %102 = vst [vmem:[%s101] sm:$0xff] %v99
    %103 = vst [vmem:[%s101 + $0x8] sm:$0xff] %v100
    %v104 = vsub.f32 %v93, %v65
    %v105 = vsub.f32 %v94, %v65
    %v106 = vsel %vm95, %v104, %v93
    %v107 = vsel %vm96, %v105, %v94
    %v108 = vadd.f32 %v106, %v59
    %v109 = vadd.f32 %v107, %v60
    %vm110 = vcmp.ge.f32.partialorder %v108, %v65
    %vm111 = vcmp.ge.f32.partialorder %v109, %v65
    %v112 = vsel %vm110, 1, 0
    %v113 = vsel %vm111, 1, 0
    %v114 = vcvt.s32.f32 %v112
    %v115 = vcvt.s32.f32 %v113
    %s116 = scalar_lea.vmem [#allocation8], 48
    %117 = vst [vmem:[%s116] sm:$0xff] %v114
    %118 = vst [vmem:[%s116 + $0x8] sm:$0xff] %v115
    %v119 = vsub.f32 %v108, %v65
    %v120 = vsub.f32 %v109, %v65
    %v121 = vsel %vm110, %v119, %v108
    %v122 = vsel %vm111, %v120, %v109
    %123 = vst [vmem:[#allocation2] sm:$0xff] %v121
    %124 = vst [vmem:[#allocation2 + $0x8] sm:$0xff] %v122
    // Predicated region
    $region26: #{tpu_custom_call.1} parent=1 // pred_check
      _
    $region27: #{tpu_custom_call.1} parent=1 // pred_check_branch
      %126 = sbr.rel (0) target = $region29
    $region28: #{tpu_custom_call.1} parent=1 // pred_region
      %s128 = ssub.s32 1024, 1024
      %129 = vsyncadd [#allocation7], %s128
      %s130 = sshll.u32 [#allocation8], 4
      %s131 = int_to_ptr.vmem [resolvable:$true] %s130
      %136 = dma.vmem_to_hbm [thread:$0]  %s131, 1024, %s5, [#allocation7], 256, 256, 16
    $region29: #{tpu_custom_call.1} parent=1 // pred_fallthru
      _
    // Predicated region
    $region30: #{tpu_custom_call.1} parent=1 // pred_check
      _
    $region31: #{tpu_custom_call.1} parent=1 // pred_check_branch
      %138 = sbr.rel (0) target = $region33
    $region32: #{tpu_custom_call.1} parent=1 // pred_region
      %139 = dma.done [#allocation7], 1024
    $region33: #{tpu_custom_call.1} parent=1 // pred_fallthru
      _
    %140 = vsyncpa [#allocation6], 1
    %141 = vsyncpa [#allocation7], 1

</llo_original>
